<compile_context>
chip_gen: v7x
topology: tpu7x:2x2x1
jax: 0.10.0
libtpu: 0.0.40
codegen_flags: <defaults>
</compile_context>

<pallas_src>
import jax
import jax.numpy as jnp
from jax import lax
from jax.experimental import pallas as pl
from jax.experimental.pallas import tpu as pltpu


def _ce_kernel(n_valid_ref, result_ref, target_ref, out_ref):
    i = pl.program_id(0)
    n_valid = n_valid_ref[0]

    res = result_ref[...]                       # [tile_n, C] probabilities
    tgt = target_ref[...]                       # [tile_n, C] scores
    tn, C = res.shape

    col = lax.broadcasted_iota(jnp.int32, (tn, C), 1)

    # torch.argmax(target, dim=1): index of the FIRST maximal element per row.
    row_max = jnp.max(tgt, axis=1, keepdims=True)                      # [tile_n, 1]
    idx = jnp.min(jnp.where(tgt == row_max, col, C),
                  axis=1, keepdims=True)                               # [tile_n, 1]

    # Gather the selected probability, THEN take the log (tile_n logs, not tile_n*C).
    sel = jnp.sum(jnp.where(col == idx, res, jnp.zeros_like(res)),
                  axis=1, keepdims=True).astype(jnp.float32)           # [tile_n, 1]
    neg_logp = -jnp.log(sel + jnp.float32(1e-9))                       # [tile_n, 1]

    # Select-mask rows of a ragged final block (select, not multiply: 0*NaN -> NaN).
    row = lax.broadcasted_iota(jnp.int32, (tn, 1), 0) + i * tn
    neg_logp = jnp.where(row < n_valid, neg_logp, jnp.float32(0.0))

    # One partial sum per grid step -> distinct output block (parallel-safe).
    out_ref[...] = jnp.sum(neg_logp, axis=0, keepdims=True)            # [1, 1]


def _round_up(x, m):
    return ((x + m - 1) // m) * m


def _vmem_capacity_bytes():
    try:
        return int(pltpu.get_tpu_info().vmem_capacity_bytes)
    except Exception:
        return 64 << 20   # smallest per-TensorCore VMEM across generations (v7x)


def _pick_tile_n(n, c, itemsize):
    # Account for lane(128)/sublane packing: the real VMEM block is
    # tile_n x round_up(C,128) x itemsize, with tile_n a multiple of the
    # dtype's sublane tile (8 f32 / 16 bf16 / 32 int8-fp8).
    sublane = max(32 // itemsize, 8)
    c_pad = _round_up(c, 128)
    row_bytes = c_pad * itemsize

    vmem_cap = _vmem_capacity_bytes()
    # 2 inputs x 2 pipeline buffers ~= half of physical VMEM, leaving headroom
    # (~16 MiB/tile on v5e/v6e's 128 MiB, ~8 MiB/tile on v7x's 64 MiB).
    target_bytes = vmem_cap // 8

    t = max(sublane, (target_bytes // row_bytes) // sublane * sublane)
    t = min(t, _round_up(n, sublane))   # never taller than the (rounded) batch
    return t, c_pad, vmem_cap


def cross_entropy_criterion(result, target):
    """result: [N, C] probabilities, target: [N, C] scores -> scalar f32 loss."""
    assert result.ndim == 2 and result.shape == target.shape
    N, C = result.shape
    itemsize = max(result.dtype.itemsize, target.dtype.itemsize)

    tile_n, c_pad, vmem_cap = _pick_tile_n(N, C, itemsize)
    num_tiles = pl.cdiv(N, tile_n)

    # Double-buffered, padding-aware input footprint + slack; clamp with headroom.
    in_bytes = 2 * tile_n * c_pad * (result.dtype.itemsize + target.dtype.itemsize)
    vmem_limit = int(min(max(in_bytes + (2 << 20), 16 << 20), int(vmem_cap * 0.85)))

    n_valid = jnp.asarray([N], dtype=jnp.int32)

    partials = pl.pallas_call(
        _ce_kernel,
        out_shape=jax.ShapeDtypeStruct((num_tiles, 1, 1), jnp.float32),
        grid_spec=pltpu.PrefetchScalarGridSpec(
            num_scalar_prefetch=1,
            grid=(num_tiles,),
            in_specs=[
                pl.BlockSpec((tile_n, C), lambda i, nv: (i, 0)),
                pl.BlockSpec((tile_n, C), lambda i, nv: (i, 0)),
            ],
            # Leading dim squeezed: kernel sees a (1, 1) block per grid step.
            out_specs=pl.BlockSpec((None, 1, 1), lambda i, nv: (i, 0, 0)),
        ),
        compiler_params=pltpu.CompilerParams(
            dimension_semantics=("parallel",),
            vmem_limit_bytes=vmem_limit,
        ),
    )(n_valid, result, target)

    return jnp.sum(partials) / jnp.float32(N)


def _reference(result, target):
    idx = jnp.argmax(target, axis=1)
    logp = jnp.log(result.astype(jnp.float32) + 1e-9)
    return -jnp.mean(jnp.take_along_axis(logp, idx[:, None], axis=1))


if __name__ == "__main__":
    key = jax.random.PRNGKey(0)
    k1, k2, k3, k4 = jax.random.split(key, 4)

    # Primary small case.
    N, C = 8, 16
    result = jax.nn.softmax(jax.random.normal(k1, (N, C), dtype=jnp.float32), axis=1)
    target = jax.random.normal(k2, (N, C), dtype=jnp.float32)
    loss = jax.block_until_ready(cross_entropy_criterion(result, target))
    ref = _reference(result, target)
    assert jnp.allclose(loss, ref, rtol=1e-5, atol=1e-6), (loss, ref)

    # Ragged batch (exercises the masked partial last block, no wrapper padding).
    N2, C2 = 13, 16
    result2 = jax.nn.softmax(jax.random.normal(k3, (N2, C2), dtype=jnp.float32), axis=1)
    target2 = jax.random.normal(k4, (N2, C2), dtype=jnp.float32)
    loss2 = jax.block_until_ready(cross_entropy_criterion(result2, target2))
    ref2 = _reference(result2, target2)
    assert jnp.allclose(loss2, ref2, rtol=1e-5, atol=1e-6), (loss2, ref2)

    print("KERNEL_OK")
</pallas_src>

<mosaic_0001>
module attributes {stable_mosaic.version = 11 : i64} {
  func.func @_ce_kernel(%arg0: i32, %arg1: memref<1xi32, #tpu.memory_space<smem>>, %arg2: memref<8x16xf32, #tpu.memory_space<vmem>>, %arg3: memref<8x16xf32, #tpu.memory_space<vmem>>, %arg4: memref<1x1x1xf32, #tpu.memory_space<vmem>>) attributes {dimension_semantics = [#tpu.dimension_semantics<parallel>], iteration_bounds = array<i64: 1>, scalar_prefetch = 1 : i64, scratch_operands = 0 : i64, tpu.core_type = #tpu.core_type<tc>, window_params = [{transform_indices = @transform_0, window_bounds = array<i64: 8, 16>}, {transform_indices = @transform_1, window_bounds = array<i64: 8, 16>}, {transform_indices = @transform_2, window_bounds = array<i64: 1, 1, 1>}]} {
    %c0 = arith.constant 0 : index
    %0 = memref.load %arg1[%c0] : memref<1xi32, #tpu.memory_space<smem>>
    %c0_0 = arith.constant 0 : index
    %c0_1 = arith.constant 0 : index
    %1 = vector.load %arg2[%c0_0, %c0_1] : memref<8x16xf32, #tpu.memory_space<vmem>>, vector<8x16xf32>
    %c0_2 = arith.constant 0 : index
    %c0_3 = arith.constant 0 : index
    %2 = vector.load %arg3[%c0_2, %c0_3] : memref<8x16xf32, #tpu.memory_space<vmem>>, vector<8x16xf32>
    %3 = tpu.iota {dimensions = array<i32: 1>} : vector<8x16xi32>
    %cst = arith.constant dense<0xFF800000> : vector<8xf32>
    %4 = vector.multi_reduction <maximumf>, %2, %cst [1] : vector<8x16xf32> to vector<8xf32>
    %5 = vector.shape_cast %4 : vector<8xf32> to vector<8x1xf32>
    %6 = vector.broadcast %5 : vector<8x1xf32> to vector<8x16xf32>
    %7 = arith.cmpf oeq, %2, %6 : vector<8x16xf32>
    %c16_i32 = arith.constant 16 : i32
    %8 = vector.broadcast %c16_i32 : i32 to vector<8x16xi32>
    %9 = arith.select %7, %3, %8 : vector<8x16xi1>, vector<8x16xi32>
    %cst_4 = arith.constant dense<2147483647> : vector<8xi32>
    %10 = vector.multi_reduction <minsi>, %9, %cst_4 [1] : vector<8x16xi32> to vector<8xi32>
    %11 = vector.shape_cast %10 : vector<8xi32> to vector<8x1xi32>
    %12 = vector.broadcast %11 : vector<8x1xi32> to vector<8x16xi32>
    %13 = arith.cmpi eq, %3, %12 : vector<8x16xi32>
    %cst_5 = arith.constant 0.000000e+00 : f32
    %14 = vector.broadcast %cst_5 : f32 to vector<8x16xf32>
    %15 = arith.select %13, %1, %14 : vector<8x16xi1>, vector<8x16xf32>
    %cst_6 = arith.constant dense<0.000000e+00> : vector<8xf32>
    %16 = vector.multi_reduction <add>, %15, %cst_6 [1] : vector<8x16xf32> to vector<8xf32>
    %17 = vector.shape_cast %16 : vector<8xf32> to vector<8x1xf32>
    %cst_7 = arith.constant 9.99999971E-10 : f32
    %18 = vector.broadcast %cst_7 : f32 to vector<8x1xf32>
    %19 = arith.addf %17, %18 : vector<8x1xf32>
    %20 = math.log %19 : vector<8x1xf32>
    %cst_8 = arith.constant 0.000000e+00 : f32
    %21 = vector.broadcast %cst_8 : f32 to vector<8x1xf32>
    %22 = arith.subf %21, %20 : vector<8x1xf32>
    %23 = tpu.iota {dimensions = array<i32: 0>} : vector<8x1xi32>
    %c8_i32 = arith.constant 8 : i32
    %24 = arith.muli %arg0, %c8_i32 : i32
    %25 = vector.broadcast %24 : i32 to vector<8x1xi32>
    %26 = arith.addi %23, %25 : vector<8x1xi32>
    %27 = vector.broadcast %0 : i32 to vector<8x1xi32>
    %28 = arith.cmpi slt, %26, %27 : vector<8x1xi32>
    %cst_9 = arith.constant 0.000000e+00 : f32
    %29 = vector.broadcast %cst_9 : f32 to vector<8x1xf32>
    %30 = arith.select %28, %22, %29 : vector<8x1xi1>, vector<8x1xf32>
    %cst_10 = arith.constant dense<0.000000e+00> : vector<1xf32>
    %31 = vector.multi_reduction <add>, %30, %cst_10 [0] : vector<8x1xf32> to vector<1xf32>
    %32 = vector.shape_cast %31 : vector<1xf32> to vector<1x1xf32>
    %c0_11 = arith.constant 0 : index
    %c0_12 = arith.constant 0 : index
    %c0_13 = arith.constant 0 : index
    %33 = vector.load %arg4[%c0_11, %c0_12, %c0_13] : memref<1x1x1xf32, #tpu.memory_space<vmem>>, vector<1x1x1xf32>
    %34 = vector.shape_cast %33 : vector<1x1x1xf32> to vector<1x1xf32>
    %35 = vector.shape_cast %32 : vector<1x1xf32> to vector<1x1x1xf32>
    tpu.vector_store %arg4[%c0_11, %c0_12, %c0_13], %35 {strides = array<i32>} : memref<1x1x1xf32, #tpu.memory_space<vmem>>, vector<1x1x1xf32>,
    return
  }
  func.func @transform_0(%arg0: i32, %arg1: memref<1xi32, #tpu.memory_space<smem>>) -> (i32, i32) {
    %c0_i32 = arith.constant 0 : i32
    %c0_i32_0 = arith.constant 0 : i32
    return %arg0, %c0_i32 : i32, i32
  }
  func.func @transform_1(%arg0: i32, %arg1: memref<1xi32, #tpu.memory_space<smem>>) -> (i32, i32) {
    %c0_i32 = arith.constant 0 : i32
    %c0_i32_0 = arith.constant 0 : i32
    return %arg0, %c0_i32 : i32, i32
  }
  func.func @transform_2(%arg0: i32, %arg1: memref<1xi32, #tpu.memory_space<smem>>) -> (i32, i32, i32) {
    %c0_i32 = arith.constant 0 : i32
    %c0_i32_0 = arith.constant 0 : i32
    %c0_i32_1 = arith.constant 0 : i32
    return %arg0, %c0_i32, %c0_i32_0 : i32, i32, i32
  }
}

</mosaic_0001>

<llo_original>
// kernel: tpu_custom_call.1
$region0: #{tpu_custom_call.1}
  #allocation0 [shape = 'u32[]', space=smem, size = 0x4, offset = 0x4, fixed_abs, tag = 'smem constant byte address 0x4 - core index']
  #allocation1 [shape = 'u32[144,128]{1,0:T(1,128)}', space=vmem, size = 0x12000, scoped, tag = 'internal scratch']
  #allocation2 [shape = 's32[1]{0}', space=sflag, size = 0x4, scoped, tag = 'scoped memory for tpu_custom_call.1']
  #allocation3 [shape = 's32[1]{0:T(128)S(6)}', space=smem, size = 0x200, scoped, tag = 'prefetched SMEM operand 0']
  %s0 = inlined_call_operand.<no memory space> [shape: s32[1], index: 0, kind: input, shape index: {}]
  %s1 = inlined_call_operand.hbm [shape: f32[8,16], index: 1, kind: input, shape index: {}]
  %s2 = inlined_call_operand.hbm [shape: f32[8,16], index: 2, kind: input, shape index: {}]
  %s3 = inlined_call_operand.hbm [shape: f32[1,1,1], index: 3, kind: output, shape index: {}]
  %s4 = sld [smem:[#allocation0]]
  $region26: #{tpu_custom_call.1} parent=0
    _
  %s6 = ssub.s32 1, %s4
  %s7 = scalar_select 0, %s6, %s4
  %8 = sst [smem:[#allocation3]] %s0
  $region1: #{tpu_custom_call.1} parent=0
    #allocation4 [shape = 'u8[4096]{0}', space=vmem, size = 0x1000, scoped, tag = 'input window, operand 1, single buffered']
    #allocation5 [shape = 's32[1]{0}', space=sflag, size = 0x4, scoped, tag = 'scoped memory for tpu_custom_call.1']
    #allocation6 [shape = 's32[1]{0}', space=sflag, size = 0x4, scoped, tag = 'scoped memory for tpu_custom_call.1']
    #allocation7 [shape = 'u8[4096]{0}', space=vmem, size = 0x1000, scoped, tag = 'input window, operand 2, single buffered']
    #allocation8 [shape = 's32[1]{0}', space=sflag, size = 0x4, scoped, tag = 'scoped memory for tpu_custom_call.1']
    #allocation9 [shape = 'u8[512]{0}', space=vmem, size = 0x400, scoped, tag = 'output window, operand 0, single buffered']
    %9 = vsyncpa [#allocation5], 0
    %10 = vsyncpa [#allocation8], 0
    %11 = vsyncpa [#allocation6], 0
    // Predicated region
    $region2: #{tpu_custom_call.1} parent=1 // pred_check
      _
    $region3: #{tpu_custom_call.1} parent=1 // pred_check_branch
      %13 = sbr.rel (0) target = $region5
    $region4: #{tpu_custom_call.1} parent=1 // pred_region
      %s15 = ssub.s32 128, 128
      %16 = vsyncadd [#allocation5], %s15
      %s18 = sshll.u32 [#allocation4], 4
      %s19 = int_to_ptr.vmem [resolvable:$true] %s18
      %21 = dma.hbm_to_vmem [thread:$0]  %s1, 128, %s19, [#allocation5]
    $region5: #{tpu_custom_call.1} parent=1 // pred_fallthru
      _
    // Predicated region
    $region6: #{tpu_custom_call.1} parent=1 // pred_check
      _
    $region7: #{tpu_custom_call.1} parent=1 // pred_check_branch
      %23 = sbr.rel (0) target = $region9
    $region8: #{tpu_custom_call.1} parent=1 // pred_region
      %s25 = ssub.s32 128, 128
      %26 = vsyncadd [#allocation8], %s25
      %s28 = sshll.u32 [#allocation7], 4
      %s29 = int_to_ptr.vmem [resolvable:$true] %s28
      %31 = dma.hbm_to_vmem [thread:$0]  %s2, 128, %s29, [#allocation8]
    $region9: #{tpu_custom_call.1} parent=1 // pred_fallthru
      _
    // Predicated region
    $region10: #{tpu_custom_call.1} parent=1 // pred_check
      _
    $region11: #{tpu_custom_call.1} parent=1 // pred_check_branch
      %33 = sbr.rel (0) target = $region13
    $region12: #{tpu_custom_call.1} parent=1 // pred_region
      %34 = dma.done [#allocation5], 128
    $region13: #{tpu_custom_call.1} parent=1 // pred_fallthru
      _
    // Predicated region
    $region14: #{tpu_custom_call.1} parent=1 // pred_check
      _
    $region15: #{tpu_custom_call.1} parent=1 // pred_check_branch
      %36 = sbr.rel (0) target = $region17
    $region16: #{tpu_custom_call.1} parent=1 // pred_region
      %37 = dma.done [#allocation8], 128
    $region17: #{tpu_custom_call.1} parent=1 // pred_fallthru
      _
    %s38 = sld [smem:[#allocation3]]
    %v39 = vld [vmem:[#allocation4] sm:$0xff]
    %v40 = vld [vmem:[#allocation7] sm:$0xff]
    %v41 = vlaneseq
    %v42 = vand.u32 %v41, 127
    %vm43 = vcmask 130048
    %v44 = vsel %vm43, %v40, -inf
    %45 = vmax.xlane.f32.xlu0 %v44
    %v46 = vpop.xlane.xlu0 %45
    %vm47 = vcmp.eq.f32.partialorder %v40, %v46
    %v48 = vsel %vm47, %v42, 16
    %v49 = vsel %vm43, %v48, 2147483647
    %v50 = vand.u32 %v49, 65535
    %v51 = vshra.s32 %v49, 16
    %v52 = vcvt.s32.f32 %v50
    %v53 = vcvt.s32.f32 %v51
    %54 = vmin.xlane.f32.xlu0 %v53
    %v55 = vpop.xlane.xlu0 %54
    %vm56 = vcmp.eq.f32.partialorder %v53, %v55
    %v57 = vsel %vm56, %v52, inf
    %58 = vmin.xlane.f32.xlu0 %v57
    %v59 = vpop.xlane.xlu0 %58
    %v60 = vcvt.f32.s32 %v59
    %v61 = vcvt.f32.s32 %v55
    %v62 = vshll.u32 %v61, 16
    %v63 = vadd.s32 %v62, %v60
    %vm64 = vcmp.eq.s32.totalorder %v42, %v63
    %v65 = vsel %vm64, %v39, 0.0
    %v66 = vsel %vm43, %v65, 0.0
    %67 = vadd.xlane.f32.xlu0 %v66
    %v68 = vpop.xlane.xlu0 %67
    %v69 = vadd.f32 %v68, 1e-09
    %v70 = vlog2.pop %v69
    %v71 = vmul.f32 %v70, 0.6931472
    %v72 = vsub.f32 0.0, %v71
    %v73 = vlaneseq
    %v74 = vshrl.u32 %v73, 7
    %s75 = smul.u32 0, 8
    %v76 = vstv %s75
    %v77 = vadd.s32 %v74, %v76
    %v78 = vstv %s38
    %vm79 = vcmp.lt.s32.totalorder %v77, %v78
    %v80 = vsel %vm79, %v72, 0.0
    %v81 = vrot.slane %v80, 4
    %v82 = vadd.f32 %v80, %v81
    %v83 = vrot.slane %v82, 2
    %v84 = vadd.f32 %v82, %v83
    %v85 = vrot.slane %v84, 1
    %v86 = vadd.f32 %v84, %v85
    %vm87 = vcmask 0
    %88 = vst.msk [vmem:[#allocation9] sm:$0x1] %vm87, %v86
    // Predicated region
    $region18: #{tpu_custom_call.1} parent=1 // pred_check
      _
    $region19: #{tpu_custom_call.1} parent=1 // pred_check_branch
      %90 = sbr.rel (0) target = $region21
    $region20: #{tpu_custom_call.1} parent=1 // pred_region
      %s92 = ssub.s32 16, 16
      %93 = vsyncadd [#allocation6], %s92
      %s95 = sshll.u32 [#allocation9], 4
      %s96 = int_to_ptr.vmem [resolvable:$true] %s95
      %98 = dma.vmem_to_hbm [thread:$0]  %s96, 16, %s3, [#allocation6]
    $region21: #{tpu_custom_call.1} parent=1 // pred_fallthru
      _
    // Predicated region
    $region22: #{tpu_custom_call.1} parent=1 // pred_check
      _
    $region23: #{tpu_custom_call.1} parent=1 // pred_check_branch
      %100 = sbr.rel (0) target = $region25
    $region24: #{tpu_custom_call.1} parent=1 // pred_region
      %101 = dma.done [#allocation6], 16
    $region25: #{tpu_custom_call.1} parent=1 // pred_fallthru
      _
    %102 = vsyncpa [#allocation5], 1
    %103 = vsyncpa [#allocation8], 1
    %104 = vsyncpa [#allocation6], 1

</llo_original>
